<compile_context>
chip_gen: v6e
topology: v6e:2x2x1
jax: 0.10.0
libtpu: 0.0.40
codegen_flags: <defaults>
</compile_context>

<pallas_src>
import jax
import jax.numpy as jnp
from jax.experimental import pallas as pl
from jax.experimental.pallas import tpu as pltpu


# ----------------------------------------------------------------------------
# helpers
# ----------------------------------------------------------------------------
def _round_up(x, m):
    return ((x + m - 1) // m) * m


def _choose_tile(n, pref, align):
    return int(min(pref, _round_up(max(n, 1), align)))


def _pad2d(x, rows, cols):
    r, c = x.shape
    if r == rows and c == cols:
        return x
    return jnp.pad(x, ((0, rows - r), (0, cols - c)))


# ----------------------------------------------------------------------------
# Pallas kernel: per-node-type Linear  (y = x @ w_t + b), tiled, f32 accumulate
# Emits both an f32 copy (residual path) and a bf16 copy (fed to the
# aggregation matmul), so no separate XLA cast pass is needed.
# ----------------------------------------------------------------------------
def _linear_kernel(x_ref, w_ref, b_ref, o32_ref, o16_ref, acc_ref):
    k = pl.program_id(2)

    @pl.when(k == 0)
    def _():
        acc_ref[...] = jnp.zeros_like(acc_ref)

    acc_ref[...] += jnp.dot(x_ref[...], w_ref[...],
                            preferred_element_type=jnp.float32)

    @pl.when(k == pl.num_programs(2) - 1)
    def _():
        y = acc_ref[...] + b_ref[...]
        o32_ref[...] = y
        o16_ref[...] = y.astype(jnp.bfloat16)


def pallas_linear(x, w_t, b):
    """x: [N, K] f32, w_t: [K, O] f32, b: [1, O] f32 -> (f32 [N,O], bf16 [N,O])."""
    n, k_in = x.shape
    o = w_t.shape[1]

    tm = _choose_tile(n, 256, 8)
    tn = _choose_tile(o, 256, 128)
    tk = _choose_tile(k_in, 512, 128)
    n_p = _round_up(n, tm)
    k_p = _round_up(k_in, tk)
    o_p = _round_up(o, tn)

    x_p = _pad2d(x.astype(jnp.float32), n_p, k_p)
    w_p = _pad2d(w_t.astype(jnp.float32), k_p, o_p)
    b_p = _pad2d(b.astype(jnp.float32), 1, o_p)

    grid = (n_p // tm, o_p // tn, k_p // tk)
    out32, out16 = pl.pallas_call(
        _linear_kernel,
        out_shape=(jax.ShapeDtypeStruct((n_p, o_p), jnp.float32),
                   jax.ShapeDtypeStruct((n_p, o_p), jnp.bfloat16)),
        grid_spec=pltpu.PrefetchScalarGridSpec(
            num_scalar_prefetch=0,
            grid=grid,
            in_specs=[
                pl.BlockSpec((tm, tk), lambda i, j, k: (i, k)),
                pl.BlockSpec((tk, tn), lambda i, j, k: (k, j)),
                pl.BlockSpec((1, tn), lambda i, j, k: (0, j)),
            ],
            out_specs=(
                pl.BlockSpec((tm, tn), lambda i, j, k: (i, j)),
                pl.BlockSpec((tm, tn), lambda i, j, k: (i, j)),
            ),
            scratch_shapes=[pltpu.VMEM((tm, tn), jnp.float32)],
        ),
        compiler_params=pltpu.CompilerParams(
            dimension_semantics=("parallel", "parallel", "arbitrary")),
    )(x_p, w_p, b_p)
    return out32[:n, :o], out16[:n, :o]


# ----------------------------------------------------------------------------
# Pallas kernel: fused multi-etype mean aggregation + cross-etype sum + residual
#
#   out = [resid +] sum_e ( (A_e @ X_e) * inv_deg_e )
#
# Grid: (dst row tiles i, out col tiles j, etype e, src K tiles k)
#   - a single f32 accumulator runs over BOTH reduction axes; the per-etype
#     row scale (1/in_degree, f32) is applied to every partial product, which
#     is mathematically identical to scaling the finished A_e @ X_e and lets
#     us keep one scratch buffer instead of two,
#   - at (e, k) == last, residual is added (f32) and the tile is stored once.
# ----------------------------------------------------------------------------
def _make_agg_kernel(use_residual):
    def kernel(a_ref, x_ref, invd_ref, r_ref, o_ref, acc_ref):
        e = pl.program_id(2)
        k = pl.program_id(3)

        @pl.when(jnp.logical_and(e == 0, k == 0))
        def _():
            acc_ref[...] = jnp.zeros_like(acc_ref)

        # binary A (exact in bf16) @ bf16 hid on the MXU, f32 accumulate;
        # mean normalization folded in as a per-row f32 scale.
        part = jnp.dot(a_ref[0], x_ref[0], preferred_element_type=jnp.float32)
        acc_ref[...] += part * invd_ref[0]

        @pl.when(jnp.logical_and(e == pl.num_programs(2) - 1,
                                 k == pl.num_programs(3) - 1))
        def _():
            res = acc_ref[...]
            if use_residual:
                res = res + r_ref[...]
            o_ref[...] = res.astype(o_ref.dtype)

    return kernel


def pallas_aggregate(adj_list, src_hid16_list, resid_f32, use_residual):
    """adj_list: list of binary adjacencies [Nd, Ns_i] (adj[v,u]=1 iff u->v);
       src_hid16_list: matching hid_src [Ns_i, O] bf16;
       resid_f32: [Nd, O] f32 (hid of the dst ntype).  Returns [Nd, O] f32."""
    nd, o = resid_f32.shape
    e_cnt = len(adj_list)
    max_ns = max(a.shape[1] for a in adj_list)

    tm = _choose_tile(nd, 256, 8)
    tn = _choose_tile(o, 256, 128)
    tk = _choose_tile(max_ns, 512, 128)
    nd_p = _round_up(nd, tm)
    o_p = _round_up(o, tn)
    k_p = _round_up(max_ns, tk)

    # binary adjacency is exact in bf16; zero-padded rows/cols contribute 0
    a_stack = jnp.stack(
        [_pad2d(a.astype(jnp.float32), nd_p, k_p) for a in adj_list]
    ).astype(jnp.bfloat16)                                   # [E, Nd_p, K_p]
    x_stack = jnp.stack(
        [_pad2d(x.astype(jnp.bfloat16), k_p, o_p) for x in src_hid16_list]
    )                                                        # [E, K_p, O_p]

    # per-etype 1/in-degree (f32, computed from the raw binary adjacency)
    invd = []
    for a in adj_list:
        deg = jnp.sum(a.astype(jnp.float32), axis=1, keepdims=True)
        inv = jnp.where(deg > 0, 1.0 / jnp.maximum(deg, 1.0), 0.0)
        invd.append(_pad2d(inv, nd_p, 1))
    invd_stack = jnp.stack(invd)                             # [E, Nd_p, 1]

    resid_p = _pad2d(resid_f32.astype(jnp.float32), nd_p, o_p)

    grid = (nd_p // tm, o_p // tn, e_cnt, k_p // tk)

    out = pl.pallas_call(
        _make_agg_kernel(use_residual),
        out_shape=jax.ShapeDtypeStruct((nd_p, o_p), jnp.float32),
        grid_spec=pltpu.PrefetchScalarGridSpec(
            num_scalar_prefetch=0,
            grid=grid,
            in_specs=[
                pl.BlockSpec((1, tm, tk), lambda i, j, e, k: (e, i, k)),
                pl.BlockSpec((1, tk, tn), lambda i, j, e, k: (e, k, j)),
                pl.BlockSpec((1, tm, 1), lambda i, j, e, k: (e, i, 0)),
                pl.BlockSpec((tm, tn), lambda i, j, e, k: (i, j)),
            ],
            out_specs=pl.BlockSpec((tm, tn), lambda i, j, e, k: (i, j)),
            scratch_shapes=[pltpu.VMEM((tm, tn), jnp.float32)],
        ),
        compiler_params=pltpu.CompilerParams(
            dimension_semantics=("parallel", "parallel",
                                 "arbitrary", "arbitrary")),
    )(a_stack, x_stack, invd_stack, resid_p)
    return out[:nd, :o]


# ----------------------------------------------------------------------------
# HeteroGCNLayer
# ----------------------------------------------------------------------------
class HeteroGCNLayer:
    def __init__(self, in_size_dict, out_size, use_residual=True, *, key):
        self.use_residual = use_residual
        self.out_size = out_size
        self.params = {}
        for name in sorted(in_size_dict):
            in_size = in_size_dict[name]
            key, k_w, k_b = jax.random.split(key, 3)
            bound = 1.0 / jnp.sqrt(jnp.float32(in_size))
            # nn.Linear: weight [out, in], bias [out]; stored transposed [in, out].
            w = jax.random.uniform(
                k_w, (in_size, out_size), jnp.float32, -bound, bound)
            b = jax.random.uniform(
                k_b, (1, out_size), jnp.float32, -bound, bound)
            self.params[name] = (w, b)

    def __call__(self, graph, fea_dict):
        """graph: dict with
             'ntypes': {ntype: num_nodes}
             'etypes': {etype: (srctype, dsttype, adj)} where adj is a dense
                       [num_dst, num_src] {0,1} float32 matrix (adj[v,u]=1 iff u->v).
        """
        # 1) per-ntype Linear (tiled Pallas matmul; emits f32 + bf16 copies)
        hid32, hid16 = {}, {}
        for ntype in graph["ntypes"]:
            w, b = self.params[ntype]
            h32, h16 = pallas_linear(fea_dict[ntype], w, b)
            hid32[ntype] = h32
            hid16[ntype] = h16

        # 2-4) fused per-etype mean aggregation + cross-etype sum + residual
        out = {}
        for ntype, n_nodes in graph["ntypes"].items():
            adjs, srcs = [], []
            for etype, (srctype, dsttype, adj) in graph["etypes"].items():
                if dsttype != ntype:
                    continue
                adjs.append(adj)
                srcs.append(hid16[srctype])
            if adjs:
                out[ntype] = pallas_aggregate(
                    adjs, srcs, hid32[ntype], self.use_residual)
            else:
                # No incoming edge types: aggregated message is 0.
                out[ntype] = hid32[ntype] if self.use_residual else jnp.zeros(
                    (n_nodes, self.out_size), jnp.float32)
        return out


# ----------------------------------------------------------------------------
# Plain-JAX f32 reference (spec semantics) for a sanity check
# ----------------------------------------------------------------------------
def reference_forward(layer, graph, fea_dict):
    hid = {
        nt: fea_dict[nt].astype(jnp.float32) @ layer.params[nt][0]
        + layer.params[nt][1]
        for nt in graph["ntypes"]
    }
    out = {}
    for ntype, n_nodes in graph["ntypes"].items():
        acc = jnp.zeros((n_nodes, layer.out_size), jnp.float32)
        for etype, (srctype, dsttype, adj) in graph["etypes"].items():
            if dsttype != ntype:
                continue
            deg = jnp.sum(adj, axis=1, keepdims=True)
            acc = acc + (adj / jnp.maximum(deg, 1.0)) @ hid[srctype]
        out[ntype] = acc + hid[ntype] if layer.use_residual else acc
    return out


# ----------------------------------------------------------------------------
# Demo
# ----------------------------------------------------------------------------
if __name__ == "__main__":
    key = jax.random.PRNGKey(0)

    # Small heterogeneous graph: two node types, three edge types.
    n_user, n_item = 16, 24
    in_size_dict = {"user": 8, "item": 16}
    out_size = 32

    key, k_fu, k_fi, k_e1, k_e2, k_e3, k_layer = jax.random.split(key, 7)
    fea_dict = {
        "user": jax.random.normal(k_fu, (n_user, in_size_dict["user"]), jnp.float32),
        "item": jax.random.normal(k_fi, (n_item, in_size_dict["item"]), jnp.float32),
    }

    def random_adj(k, n_dst, n_src, p=0.25):
        return (jax.random.uniform(k, (n_dst, n_src)) < p).astype(jnp.float32)

    graph = {
        "ntypes": {"user": n_user, "item": n_item},
        "etypes": {
            "follows": ("user", "user", random_adj(k_e1, n_user, n_user)),
            "buys": ("user", "item", random_adj(k_e2, n_item, n_user)),
            "bought-by": ("item", "user", random_adj(k_e3, n_user, n_item)),
        },
    }

    layer = HeteroGCNLayer(in_size_dict, out_size, use_residual=True, key=k_layer)

    out = layer(graph, fea_dict)
    out = jax.tree_util.tree_map(jax.block_until_ready, out)

    ref = reference_forward(layer, graph, fea_dict)
    for nt in out:
        assert out[nt].shape == (graph["ntypes"][nt], out_size)
        # Aggregation consumes bf16 hid (f32 accumulation, exact binary A,
        # f32 inv-deg scaling & residual) -> tolerance sized for bf16 rounding.
        assert jnp.allclose(out[nt], ref[nt], atol=5e-2, rtol=5e-2), nt

    print("KERNEL_OK")
</pallas_src>

<mosaic_0001>
module attributes {stable_mosaic.version = 11 : i64} {
  func.func @_linear_kernel(%arg0: i32, %arg1: i32, %arg2: i32, %arg3: memref<16x128xf32, #tpu.memory_space<vmem>>, %arg4: memref<128x128xf32, #tpu.memory_space<vmem>>, %arg5: memref<1x128xf32, #tpu.memory_space<vmem>>, %arg6: memref<16x128xf32, #tpu.memory_space<vmem>>, %arg7: memref<16x128xbf16, #tpu.memory_space<vmem>>, %arg8: memref<16x128xf32, #tpu.memory_space<vmem>>) attributes {dimension_semantics = [#tpu.dimension_semantics<parallel>, #tpu.dimension_semantics<parallel>, #tpu.dimension_semantics<arbitrary>], iteration_bounds = array<i64: 1, 1, 1>, scalar_prefetch = 0 : i64, scratch_operands = 1 : i64, tpu.core_type = #tpu.core_type<tc>, window_params = [{transform_indices = @transform_0, window_bounds = array<i64: 16, 128>}, {transform_indices = @transform_1, window_bounds = array<i64: 128, 128>}, {transform_indices = @transform_2, window_bounds = array<i64: 1, 128>}, {transform_indices = @transform_3, window_bounds = array<i64: 16, 128>}, {transform_indices = @transform_4, window_bounds = array<i64: 16, 128>}]} {
    %c0_i32 = arith.constant 0 : i32
    %0 = arith.cmpi eq, %arg2, %c0_i32 : i32
    %1 = arith.extui %0 : i1 to i32
    %c0_i32_0 = arith.constant 0 : i32
    %2 = arith.cmpi ne, %1, %c0_i32_0 : i32
    scf.if %2 {
      %cst_10 = arith.constant 0.000000e+00 : f32
      %12 = vector.broadcast %cst_10 : f32 to vector<16x128xf32>
      %c0_11 = arith.constant 0 : index
      %c0_12 = arith.constant 0 : index
      %13 = vector.load %arg8[%c0_11, %c0_12] : memref<16x128xf32, #tpu.memory_space<vmem>>, vector<16x128xf32>
      tpu.vector_store %arg8[%c0_11, %c0_12], %12 {strides = array<i32>} : memref<16x128xf32, #tpu.memory_space<vmem>>, vector<16x128xf32>,
    } else {
    }
    %c0 = arith.constant 0 : index
    %c0_1 = arith.constant 0 : index
    %3 = vector.load %arg8[%c0, %c0_1] : memref<16x128xf32, #tpu.memory_space<vmem>>, vector<16x128xf32>
    %c0_2 = arith.constant 0 : index
    %c0_3 = arith.constant 0 : index
    %4 = vector.load %arg3[%c0_2, %c0_3] : memref<16x128xf32, #tpu.memory_space<vmem>>, vector<16x128xf32>
    %c0_4 = arith.constant 0 : index
    %c0_5 = arith.constant 0 : index
    %5 = vector.load %arg4[%c0_4, %c0_5] : memref<128x128xf32, #tpu.memory_space<vmem>>, vector<128x128xf32>
    %cst = arith.constant dense<0.000000e+00> : vector<16x128xf32>
    %6 = tpu.matmul %4, %5, %cst {dimension_numbers = #tpu.dot_dimension_numbers<[1], [0], [0], [1], [0, 0, 1, 1], [], []>} : vector<16x128xf32>, vector<128x128xf32>, vector<16x128xf32> -> vector<16x128xf32>
    %7 = arith.addf %3, %6 : vector<16x128xf32>
    %c0_6 = arith.constant 0 : index
    %c0_7 = arith.constant 0 : index
    %8 = vector.load %arg8[%c0_6, %c0_7] : memref<16x128xf32, #tpu.memory_space<vmem>>, vector<16x128xf32>
    tpu.vector_store %arg8[%c0_6, %c0_7], %7 {strides = array<i32>} : memref<16x128xf32, #tpu.memory_space<vmem>>, vector<16x128xf32>,
    %c0_i32_8 = arith.constant 0 : i32
    %9 = arith.cmpi eq, %arg2, %c0_i32_8 : i32
    %10 = arith.extui %9 : i1 to i32
    %c0_i32_9 = arith.constant 0 : i32
    %11 = arith.cmpi ne, %10, %c0_i32_9 : i32
    scf.if %11 {
      %c0_10 = arith.constant 0 : index
      %c0_11 = arith.constant 0 : index
      %12 = vector.load %arg8[%c0_10, %c0_11] : memref<16x128xf32, #tpu.memory_space<vmem>>, vector<16x128xf32>
      %c0_12 = arith.constant 0 : index
      %c0_13 = arith.constant 0 : index
      %13 = vector.load %arg5[%c0_12, %c0_13] : memref<1x128xf32, #tpu.memory_space<vmem>>, vector<1x128xf32>
      %14 = vector.broadcast %13 : vector<1x128xf32> to vector<16x128xf32>
      %15 = arith.addf %12, %14 : vector<16x128xf32>
      %c0_14 = arith.constant 0 : index
      %c0_15 = arith.constant 0 : index
      %16 = vector.load %arg6[%c0_14, %c0_15] : memref<16x128xf32, #tpu.memory_space<vmem>>, vector<16x128xf32>
      tpu.vector_store %arg6[%c0_14, %c0_15], %15 {strides = array<i32>} : memref<16x128xf32, #tpu.memory_space<vmem>>, vector<16x128xf32>,
      %17 = arith.truncf %15 : vector<16x128xf32> to vector<16x128xbf16>
      %c0_16 = arith.constant 0 : index
      %c0_17 = arith.constant 0 : index
      %18 = vector.load %arg7[%c0_16, %c0_17] : memref<16x128xbf16, #tpu.memory_space<vmem>>, vector<16x128xbf16>
      tpu.vector_store %arg7[%c0_16, %c0_17], %17 {strides = array<i32>} : memref<16x128xbf16, #tpu.memory_space<vmem>>, vector<16x128xbf16>,
    } else {
    }
    return
  }
  func.func @transform_0(%arg0: i32, %arg1: i32, %arg2: i32) -> (i32, i32) {
    %c0_i32 = arith.constant 0 : i32
    return %arg0, %arg2 : i32, i32
  }
  func.func @transform_1(%arg0: i32, %arg1: i32, %arg2: i32) -> (i32, i32) {
    %c0_i32 = arith.constant 0 : i32
    return %arg2, %arg1 : i32, i32
  }
  func.func @transform_2(%arg0: i32, %arg1: i32, %arg2: i32) -> (i32, i32) {
    %c0_i32 = arith.constant 0 : i32
    %c0_i32_0 = arith.constant 0 : i32
    return %c0_i32, %arg1 : i32, i32
  }
  func.func @transform_3(%arg0: i32, %arg1: i32, %arg2: i32) -> (i32, i32) {
    %c0_i32 = arith.constant 0 : i32
    return %arg0, %arg1 : i32, i32
  }
  func.func @transform_4(%arg0: i32, %arg1: i32, %arg2: i32) -> (i32, i32) {
    %c0_i32 = arith.constant 0 : i32
    return %arg0, %arg1 : i32, i32
  }
}

</mosaic_0001>

<llo_original>
// kernel: tpu_custom_call.1
$region0: #{tpu_custom_call.1}
  #allocation0 [shape = 'u32[]', space=smem, size = 0x4, offset = 0x4, fixed_abs, tag = 'smem constant byte address 0x4 - core index']
  #allocation1 [shape = 'u32[144,128]{1,0:T(1,128)}', space=vmem, size = 0x12000, scoped, tag = 'internal scratch']
  #allocation2 [shape = 'f32[16,128]{1,0:T(8,128)}', space=vmem, size = 0x2000, scoped, tag = 'scratch operand']
  %s0 = inlined_call_operand.hbm [shape: f32[16,128], index: 0, kind: input, shape index: {}]
  %s1 = inlined_call_operand.hbm [shape: f32[128,128], index: 1, kind: input, shape index: {}]
  %s2 = inlined_call_operand.vmem [shape: f32[1,128], index: 2, kind: input, shape index: {}]
  %s3 = inlined_call_operand.hbm [shape: f32[16,128], index: 3, kind: output, shape index: {0}]
  %s4 = inlined_call_operand.hbm [shape: bf16[16,128], index: 4, kind: output, shape index: {1}]
  %5 = xla_tuple %s3, %s4
  %s6 = sld [smem:[#allocation0]]
  $region46: #{tpu_custom_call.1} parent=0
    _
  %s8 = ssub.s32 1, %s6
  %s9 = scalar_select 0, %s8, %s6
  $region1: #{tpu_custom_call.1} parent=0
    #allocation3 [shape = 'u8[8192]{0}', space=vmem, size = 0x2000, scoped, tag = 'input window, operand 0, single buffered']
    #allocation4 [shape = 's32[1]{0}', space=sflag, size = 0x4, scoped, tag = 'scoped memory for tpu_custom_call.1']
    #allocation5 [shape = 's32[1]{0}', space=sflag, size = 0x4, scoped, tag = 'scoped memory for tpu_custom_call.1']
    #allocation6 [shape = 'u8[65536]{0}', space=vmem, size = 0x10000, scoped, tag = 'input window, operand 1, single buffered']
    #allocation7 [shape = 's32[1]{0}', space=sflag, size = 0x4, scoped, tag = 'scoped memory for tpu_custom_call.1']
    #allocation8 [shape = 'u8[8192]{0}', space=vmem, size = 0x2000, scoped, tag = 'output window, operand 0, single buffered']
    #allocation9 [shape = 'u8[4096]{0}', space=vmem, size = 0x1000, scoped, tag = 'output window, operand 1, single buffered']
    #allocation10 [shape = 's32[1]{0}', space=sflag, size = 0x4, scoped, tag = 'scoped memory for tpu_custom_call.1']
    %10 = vsyncpa [#allocation4], 0
    %11 = vsyncpa [#allocation7], 0
    %12 = vsyncpa [#allocation5], 0
    %13 = vsyncpa [#allocation10], 0
    // Predicated region
    $region2: #{tpu_custom_call.1} parent=1 // pred_check
      _
    $region3: #{tpu_custom_call.1} parent=1 // pred_check_branch
      %15 = sbr.rel (0) target = $region5
    $region4: #{tpu_custom_call.1} parent=1 // pred_region
      %s17 = ssub.s32 256, 256
      %18 = vsyncadd [#allocation4], %s17
      %s19 = sshll.u32 [#allocation3], 4
      %s20 = int_to_ptr.vmem [resolvable:$true] %s19
      %25 = dma.hbm_to_vmem [thread:$0]  %s0, 256, %s20, [#allocation4], 128, 128, 8
    $region5: #{tpu_custom_call.1} parent=1 // pred_fallthru
      _
    // Predicated region
    $region6: #{tpu_custom_call.1} parent=1 // pred_check
      _
    $region7: #{tpu_custom_call.1} parent=1 // pred_check_branch
      %27 = sbr.rel (0) target = $region9
    $region8: #{tpu_custom_call.1} parent=1 // pred_region
      %s29 = ssub.s32 2048, 2048
      %30 = vsyncadd [#allocation7], %s29
      %s31 = sshll.u32 [#allocation6], 4
      %s32 = int_to_ptr.vmem [resolvable:$true] %s31
      %37 = dma.hbm_to_vmem [thread:$0]  %s1, 2048, %s32, [#allocation7], 128, 128, 8
    $region9: #{tpu_custom_call.1} parent=1 // pred_fallthru
      _
    // Predicated region
    $region10: #{tpu_custom_call.1} parent=1 // pred_check
      _
    $region11: #{tpu_custom_call.1} parent=1 // pred_check_branch
      %39 = sbr.rel (0) target = $region13
    $region12: #{tpu_custom_call.1} parent=1 // pred_region
      _
    $region13: #{tpu_custom_call.1} parent=1 // pred_fallthru
      _
    // Predicated region
    $region14: #{tpu_custom_call.1} parent=1 // pred_check
      _
    $region15: #{tpu_custom_call.1} parent=1 // pred_check_branch
      %41 = sbr.rel (0) target = $region17
    $region16: #{tpu_custom_call.1} parent=1 // pred_region
      %42 = dma.done [#allocation4], 256
    $region17: #{tpu_custom_call.1} parent=1 // pred_fallthru
      _
    // Predicated region
    $region18: #{tpu_custom_call.1} parent=1 // pred_check
      _
    $region19: #{tpu_custom_call.1} parent=1 // pred_check_branch
      %44 = sbr.rel (0) target = $region21
    $region20: #{tpu_custom_call.1} parent=1 // pred_region
      %45 = dma.done [#allocation7], 2048
    $region21: #{tpu_custom_call.1} parent=1 // pred_fallthru
      _
    %p46 = scmp.eq.s32.totalorder 0, 0
    // Predicated region
    $region22: #{tpu_custom_call.1} parent=1 // pred_check
      %p47 = pneg %p46
    $region23: #{tpu_custom_call.1} parent=1 // pred_check_branch
      %49 = sbr.rel (%p47) target = $region25
    $region24: #{tpu_custom_call.1} parent=1 // pred_region
      %50 = vst [vmem:[#allocation2] sm:$0xff] 0.0
      %51 = vst [vmem:[#allocation2 + $0x8] sm:$0xff] 0.0
    $region25: #{tpu_custom_call.1} parent=1 // pred_fallthru
      _
    %v52 = vld [vmem:[#allocation2] sm:$0xff]
    %v53 = vld [vmem:[#allocation2 + $0x8] sm:$0xff]
    %v54 = vld [vmem:[#allocation3] sm:$0xff]
    %v55 = vld [vmem:[#allocation3 + $0x8] sm:$0xff]
    %v56 = vld [vmem:[#allocation6] sm:$0xff]
    %v57 = vld [vmem:[#allocation6 + $0x8] sm:$0xff]
    %v58 = vld [vmem:[#allocation6 + $0x10] sm:$0xff]
    %v59 = vld [vmem:[#allocation6 + $0x18] sm:$0xff]
    %v60 = vld [vmem:[#allocation6 + $0x20] sm:$0xff]
    %v61 = vld [vmem:[#allocation6 + $0x28] sm:$0xff]
    %v62 = vld [vmem:[#allocation6 + $0x30] sm:$0xff]
    %v63 = vld [vmem:[#allocation6 + $0x38] sm:$0xff]
    %v64 = vld [vmem:[#allocation6 + $0x40] sm:$0xff]
    %v65 = vld [vmem:[#allocation6 + $0x48] sm:$0xff]
    %v66 = vld [vmem:[#allocation6 + $0x50] sm:$0xff]
    %v67 = vld [vmem:[#allocation6 + $0x58] sm:$0xff]
    %v68 = vld [vmem:[#allocation6 + $0x60] sm:$0xff]
    %v69 = vld [vmem:[#allocation6 + $0x68] sm:$0xff]
    %v70 = vld [vmem:[#allocation6 + $0x70] sm:$0xff]
    %v71 = vld [vmem:[#allocation6 + $0x78] sm:$0xff]
    %72 = vmatprep.subr.mxu0 0.0
    %73 = vmatpush1.msra.mxu0 %v71
    %74 = vmatprep.subr.mxu0 0.0
    %75 = vmatpush1.msra.mxu0 %v70
    %76 = vmatprep.subr.mxu0 0.0
    %77 = vmatpush1.msra.mxu0 %v69
    %78 = vmatprep.subr.mxu0 0.0
    %79 = vmatpush1.msra.mxu0 %v68
    %80 = vmatprep.subr.mxu0 0.0
    %81 = vmatpush1.msra.mxu0 %v67
    %82 = vmatprep.subr.mxu0 0.0
    %83 = vmatpush1.msra.mxu0 %v66
    %84 = vmatprep.subr.mxu0 0.0
    %85 = vmatpush1.msra.mxu0 %v65
    %86 = vmatprep.subr.mxu0 0.0
    %87 = vmatpush1.msra.mxu0 %v64
    %88 = vmatprep.subr.mxu0 0.0
    %89 = vmatpush1.msra.mxu0 %v63
    %90 = vmatprep.subr.mxu0 0.0
    %91 = vmatpush1.msra.mxu0 %v62
    %92 = vmatprep.subr.mxu0 0.0
    %93 = vmatpush1.msra.mxu0 %v61
    %94 = vmatprep.subr.mxu0 0.0
    %95 = vmatpush1.msra.mxu0 %v60
    %96 = vmatprep.subr.mxu0 0.0
    %97 = vmatpush1.msra.mxu0 %v59
    %98 = vmatprep.subr.mxu0 0.0
    %99 = vmatpush1.msra.mxu0 %v58
    %100 = vmatprep.subr.mxu0 0.0
    %101 = vmatpush1.msra.mxu0 %v57
    %102 = vmatprep.subr.mxu0 0.0
    %103 = vmatpush1.msra.mxu0 %v56
    %104 = vmatprep.subr.mxu0 0.0
    %105 = vmatpush2.msra.mxu0 0.0
    %106 = vmatprep.subr.mxu0 0.0
    %107 = vmatpush2.msra.mxu0 0.0
    %108 = vmatprep.subr.mxu0 0.0
    %109 = vmatpush2.msra.mxu0 0.0
    %110 = vmatprep.subr.mxu0 0.0
    %111 = vmatpush2.msra.mxu0 0.0
    %112 = vmatprep.subr.mxu0 0.0
    %113 = vmatpush2.msra.mxu0 0.0
    %114 = vmatprep.subr.mxu0 0.0
    %115 = vmatpush2.msra.mxu0 0.0
    %116 = vmatprep.subr.mxu0 0.0
    %117 = vmatpush2.msra.mxu0 0.0
    %118 = vmatprep.subr.mxu0 0.0
    %119 = vmatpush2.msra.mxu0 0.0
    %120 = vmatprep.subr.mxu0 0.0
    %121 = vmatpush2.msra.mxu0 0.0
    %122 = vmatprep.subr.mxu0 0.0
    %123 = vmatpush2.msra.mxu0 0.0
    %124 = vmatprep.subr.mxu0 0.0
    %125 = vmatpush2.msra.mxu0 0.0
    %126 = vmatprep.subr.mxu0 0.0
    %127 = vmatpush2.msra.mxu0 0.0
    %128 = vmatprep.subr.mxu0 0.0
    %129 = vmatpush2.msra.mxu0 0.0
    %130 = vmatprep.subr.mxu0 0.0
    %131 = vmatpush2.msra.mxu0 0.0
    %132 = vmatprep.subr.mxu0 0.0
    %133 = vmatpush2.msra.mxu0 0.0
    %134 = vmatprep.subr.mxu0 0.0
    %135 = vmatpush2.msra.mxu0 0.0
    %136 = vmatprep.mubr.f32.mxu0 0.0
    %137 = vmatmul.mubr.f32.gmra.mxu0 %v54
    %v138 = vpop.f32.mrf.mxu0
    %v139 = vadd.f32 0.0, %v138
    %v140 = vpop.f32.mrf.mxu0
    %141 = vmatprep.mubr.f32.mxu0 0.0
    %142 = vmatmul.mubr.f32.gmra.mxu0 %v55
    %v143 = vpop.f32.mrf.mxu0
    %v144 = vadd.f32 0.0, %v143
    %v145 = vpop.f32.mrf.mxu0
    %146 = vdwg.mxu0
    %v147 = vadd.f32 %v52, %v139
    %v148 = vadd.f32 %v53, %v144
    %149 = vst [vmem:[#allocation2] sm:$0xff] %v147
    %150 = vst [vmem:[#allocation2 + $0x8] sm:$0xff] %v148
    // Predicated region
    $region26: #{tpu_custom_call.1} parent=1 // pred_check
      %p151 = pneg %p46
    $region27: #{tpu_custom_call.1} parent=1 // pred_check_branch
      %153 = sbr.rel (%p151) target = $region29
    $region28: #{tpu_custom_call.1} parent=1 // pred_region
      %v154 = vld [vmem:[#allocation2] sm:$0xff]
      %v155 = vld [vmem:[#allocation2 + $0x8] sm:$0xff]
      %v156 = vld [vmem:[%s2] sm:$0x1]
      %v158 = vlaneseq
      %v159 = vshrl.u32 %v158, 7
      %v160 = vsub.s32 0, %v159
      %v161 = vrot.slane %v156, %v160
      %v163 = vadd.f32 %v154, %v161
      %v164 = vadd.f32 %v155, %v161
      %165 = vst [vmem:[#allocation8] sm:$0xff] %v163
      %166 = vst [vmem:[#allocation8 + $0x8] sm:$0xff] %v164
      %v167 = vpack.c.bf16 %v164, %v163
      %v169 = vunpack.c.l.b16 %v167
      %v170 = vunpack.c.h.b16 %v167
      %v171 = vpack.c.b16 %v169, %v169
      %v172 = vpack.c.b16 %v170, %v170
      %175 = vst [vmem:[#allocation9] sm:$0xf] %v171
      %176 = vst [vmem:[#allocation9 + $0x4] sm:$0xf] %v172
    $region29: #{tpu_custom_call.1} parent=1 // pred_fallthru
      _
    // Predicated region
    $region30: #{tpu_custom_call.1} parent=1 // pred_check
      _
    $region31: #{tpu_custom_call.1} parent=1 // pred_check_branch
      %178 = sbr.rel (0) target = $region33
    $region32: #{tpu_custom_call.1} parent=1 // pred_region
      %s180 = ssub.s32 256, 256
      %181 = vsyncadd [#allocation5], %s180
      %s182 = sshll.u32 [#allocation8], 4
      %s183 = int_to_ptr.vmem [resolvable:$true] %s182
      %188 = dma.vmem_to_hbm [thread:$0]  %s183, 256, %s3, [#allocation5], 128, 128, 8
    $region33: #{tpu_custom_call.1} parent=1 // pred_fallthru
      _
    // Predicated region
    $region34: #{tpu_custom_call.1} parent=1 // pred_check
      _
    $region35: #{tpu_custom_call.1} parent=1 // pred_check_branch
      %190 = sbr.rel (0) target = $region37
    $region36: #{tpu_custom_call.1} parent=1 // pred_region
      %s192 = ssub.s32 128, 128
      %193 = vsyncadd [#allocation10], %s192
      %s194 = sshll.u32 [#allocation9], 4
      %s195 = int_to_ptr.vmem [resolvable:$true] %s194
      %200 = dma.vmem_to_hbm [thread:$0]  %s195, 128, %s4, [#allocation10], 64, 64, 4
    $region37: #{tpu_custom_call.1} parent=1 // pred_fallthru
      _
    // Predicated region
    $region38: #{tpu_custom_call.1} parent=1 // pred_check
      _
    $region39: #{tpu_custom_call.1} parent=1 // pred_check_branch
      %202 = sbr.rel (0) target = $region41
    $region40: #{tpu_custom_call.1} parent=1 // pred_region
      %203 = dma.done [#allocation5], 256
    $region41: #{tpu_custom_call.1} parent=1 // pred_fallthru
      _
    // Predicated region
    $region42: #{tpu_custom_call.1} parent=1 // pred_check
      _
    $region43: #{tpu_custom_call.1} parent=1 // pred_check_branch
      %205 = sbr.rel (0) target = $region45
    $region44: #{tpu_custom_call.1} parent=1 // pred_region
      %206 = dma.done [#allocation10], 128
    $region45: #{tpu_custom_call.1} parent=1 // pred_fallthru
      _
    %207 = vsyncpa [#allocation4], 1
    %208 = vsyncpa [#allocation7], 1
    %209 = vsyncpa [#allocation5], 1
    %210 = vsyncpa [#allocation10], 1

</llo_original>
